<compile_context>
chip_gen: v5e
topology: v5e:2x2
jax: 0.10.0
libtpu: 0.0.40
codegen_flags: <defaults>
</compile_context>

<pallas_src>
import functools

import jax
import jax.numpy as jnp
from jax.experimental import pallas as pl
from jax.experimental.pallas import tpu as pltpu

EPS = 1e-6


def _round_up(n, m):
    return (n + m - 1) // m * m


def _layernorm_rows(z, gain, bias):
    """Torch-matching LayerNorm on f32 rows: unbiased std, eps added to std."""
    d = z.shape[-1]
    mean = jnp.mean(z, axis=-1, keepdims=True)
    centered = z - mean                                   # reused for var & output
    var_unbiased = jnp.sum(centered * centered, axis=-1, keepdims=True) / (d - 1)
    denom = jnp.sqrt(var_unbiased) + EPS
    # Per-row divide -> EUP reciprocal (otherwise-idle slot) + one Newton step
    # to recover near-f32 precision.
    inv = pl.reciprocal(denom, approx=True)
    inv = inv * (2.0 - denom * inv)
    return gain * centered * inv + bias


def _resident_kernel(x_ref, w_ref, b_ref, gain_ref, bias_ref, o_ref, *, mxu_dtype):
    """Whole weight resident in VMEM; one grid axis over token tiles."""
    x_nat = x_ref[...]                                            # (tile, D)
    x_mxu = x_nat if mxu_dtype is None else x_nat.astype(mxu_dtype)
    y = jnp.dot(x_mxu, w_ref[...], preferred_element_type=jnp.float32)
    # dropout (eval mode) == identity; residual add + LN statistics in f32.
    z = x_nat.astype(jnp.float32) + y + b_ref[...].astype(jnp.float32)
    out = _layernorm_rows(z, gain_ref[...].astype(jnp.float32),
                          bias_ref[...].astype(jnp.float32))
    o_ref[...] = out.astype(o_ref.dtype)


def _ktiled_kernel(xk_ref, w_ref, xfull_ref, b_ref, gain_ref, bias_ref,
                   o_ref, acc_ref, *, mxu_dtype):
    """K-tiled weight: grid = (token tiles, K blocks); acc_ref is f32 scratch."""
    k = pl.program_id(1)

    @pl.when(k == 0)
    def _init():
        acc_ref[...] = jnp.zeros_like(acc_ref)

    xk = xk_ref[...]                                              # (tile, tk)
    if mxu_dtype is not None:
        xk = xk.astype(mxu_dtype)
    acc_ref[...] += jnp.dot(xk, w_ref[...], preferred_element_type=jnp.float32)

    @pl.when(k == pl.num_programs(1) - 1)
    def _finish():
        # xfull has a constant K index -> fetched once per token tile.
        z = (acc_ref[...] + xfull_ref[...].astype(jnp.float32)
             + b_ref[...].astype(jnp.float32))
        out = _layernorm_rows(z, gain_ref[...].astype(jnp.float32),
                              bias_ref[...].astype(jnp.float32))
        o_ref[...] = out.astype(o_ref.dtype)


def _vmem_cap_bytes():
    """~85% of physical VMEM (generation-aware); conservative 54 MiB fallback."""
    try:
        phys = int(getattr(pltpu.get_tpu_info(), "vmem_capacity_bytes"))
        if phys <= 0:
            raise ValueError("bad vmem_capacity_bytes")
    except Exception:
        phys = 64 << 20          # v7x-sized fallback: safe on every generation
    return int(phys * 0.85)


def sublayer_connection(x, w, b, gain, bias, *, tile_t=None, tk=None,
                        mxu_dtype=None):
    """x: (B, S, D); w: (D, D); b, gain, bias: (D,).

    tile_t: token-rows per grid step (auto if None).
    tk:     reduction (K) tile; None = auto (resident weight when it fits).
    mxu_dtype: optional dtype (e.g. jnp.bfloat16) to feed the MXU with, while
               keeping the residual add and LN statistics in f32.
    """
    B, S, D = x.shape
    T = B * S
    x2d = x.reshape(T, D)

    if mxu_dtype is not None:
        w = w.astype(mxu_dtype)          # halves resident/streamed weight bytes

    xi = jnp.dtype(x.dtype).itemsize
    wi = jnp.dtype(w.dtype).itemsize
    oi = xi

    cap = _vmem_cap_bytes()
    headroom = 2 << 20

    # --- K (reduction) tiling decision -------------------------------------
    w_bytes = D * D * wi
    if tk is None:
        if D % 128 == 0 and 2 * w_bytes > int(0.4 * cap):
            # Stream the weight: target ~4 MiB per block, multiple of 128
            # lanes in K, and dividing D exactly (no junk columns feeding the
            # accumulation).
            blk_target = 4 << 20
            tk = max(128, min(D, (blk_target // max(D * wi, 1)) // 128 * 128))
            while D % tk:
                tk -= 128
        else:
            tk = D
    tk = min(tk, D)
    if tk != D and not (tk % 128 == 0 and D % tk == 0):
        tk = D                            # invalid override -> resident path
    k_tiled = tk != D
    n_k = D // tk if k_tiled else 1

    # --- Token tile (dtype-aware sublane multiple, VMEM-budgeted) ----------
    sub = {1: 32, 2: 16}.get(xi, 8)
    if tile_t is None:
        tile_t = (2048 if D <= 512 else
                  1024 if D <= 1024 else
                  512 if D <= 2048 else 256)

    if k_tiled:
        w_vmem = 2 * tk * D * wi                               # double-buffered blocks
        per_row = 2 * tk * xi + 2 * D * xi + 2 * D * oi + D * 4   # xk + xfull + out + acc
    else:
        w_vmem = 2 * w_bytes                                   # conservative (fallback = 2 bufs)
        per_row = 2 * D * xi + 2 * D * oi
    params_vmem = 2 * 3 * D * 4
    budget = cap - w_vmem - params_vmem - headroom
    max_rows = max(sub, budget // max(per_row, 1))

    tile = max(sub, min(_round_up(tile_t, sub), _round_up(T, sub),
                        (max_rows // sub) * sub))
    # Give megacore (v7x: 2 TCs on the "parallel" token axis) >=2 tiles.
    if pl.cdiv(T, tile) < 2 and T > sub:
        tile = max(sub, _round_up(pl.cdiv(T, 2), sub))
    n_t = pl.cdiv(T, tile)                # boundary block clamped by Pallas

    cost = pl.CostEstimate(
        flops=2 * T * D * D + 10 * T * D,
        transcendentals=2 * T,            # sqrt + reciprocal per row
        bytes_accessed=(T * D * xi * (2 if k_tiled else 1)
                        + w_bytes + 3 * D * 4 + T * D * oi),
    )

    b2d = b.reshape(1, D)
    gain2d = gain.reshape(1, D)
    bias2d = bias.reshape(1, D)

    def _const(shape, index_map, single):
        # Constant-index operands: request a single buffer (no double
        # buffering needed when the block never changes).
        if single:
            return pl.BlockSpec(shape, index_map, pipeline_mode=pl.Buffered(1))
        return pl.BlockSpec(shape, index_map)

    def _run(single_buffer_consts):
        if k_tiled:
            kern = functools.partial(_ktiled_kernel, mxu_dtype=mxu_dtype)
            grid = (n_t, n_k)
            in_specs = [
                pl.BlockSpec((tile, tk), lambda i, k: (i, k)),    # x K-slice (MXU lhs)
                pl.BlockSpec((tk, D), lambda i, k: (k, 0)),       # weight K-block (streamed)
                pl.BlockSpec((tile, D), lambda i, k: (i, 0)),     # x full row (residual)
                _const((1, D), lambda i, k: (0, 0), single_buffer_consts),
                _const((1, D), lambda i, k: (0, 0), single_buffer_consts),
                _const((1, D), lambda i, k: (0, 0), single_buffer_consts),
            ]
            out_specs = pl.BlockSpec((tile, D), lambda i, k: (i, 0))
            scratch = [pltpu.VMEM((tile, D), jnp.float32)]
            semantics = ("parallel", "arbitrary")   # reduction axis last
            args = (x2d, w, x2d, b2d, gain2d, bias2d)
        else:
            kern = functools.partial(_resident_kernel, mxu_dtype=mxu_dtype)
            grid = (n_t,)
            in_specs = [
                pl.BlockSpec((tile, D), lambda i: (i, 0)),        # x: tiled, pipelined
                _const((D, D), lambda i: (0, 0), single_buffer_consts),   # weight: resident
                _const((1, D), lambda i: (0, 0), single_buffer_consts),
                _const((1, D), lambda i: (0, 0), single_buffer_consts),
                _const((1, D), lambda i: (0, 0), single_buffer_consts),
            ]
            out_specs = pl.BlockSpec((tile, D), lambda i: (i, 0))
            scratch = []
            semantics = ("parallel",)
            args = (x2d, w, b2d, gain2d, bias2d)

        fn = pl.pallas_call(
            kern,
            out_shape=jax.ShapeDtypeStruct((T, D), x.dtype),
            grid_spec=pltpu.PrefetchScalarGridSpec(
                num_scalar_prefetch=0,
                grid=grid,
                in_specs=in_specs,
                out_specs=out_specs,
                scratch_shapes=scratch,
            ),
            compiler_params=pltpu.CompilerParams(
                dimension_semantics=semantics,
                vmem_limit_bytes=int(cap),
            ),
            cost_estimate=cost,
        )
        return fn(*args)

    try:
        out2d = _run(True)
    except Exception:
        # pipeline_mode=pl.Buffered(1) not supported on this jax/libtpu combo;
        # fall back to default double-buffered constant operands.
        out2d = _run(False)

    return out2d.reshape(B, S, D)


def reference(x, w, b, gain, bias):
    x = x.astype(jnp.float32)
    y = x @ w.astype(jnp.float32) + b.astype(jnp.float32)
    z = x + y
    d = z.shape[-1]
    mean = jnp.mean(z, axis=-1, keepdims=True)
    centered = z - mean
    std = jnp.sqrt(jnp.sum(centered * centered, axis=-1, keepdims=True) / (d - 1))
    return (gain.astype(jnp.float32) * centered / (std + EPS)
            + bias.astype(jnp.float32))


if __name__ == "__main__":
    key = jax.random.PRNGKey(0)
    # Small but lane-dense shapes: D multiple of 128 keeps output stores
    # unmasked; S=9 makes T=18 so the clamped-boundary-tile path is exercised.
    B, S, D = 2, 9, 128

    kx, kw, kb, kg, kbeta = jax.random.split(key, 5)
    x = jax.random.normal(kx, (B, S, D), dtype=jnp.float32)
    w = jax.random.normal(kw, (D, D), dtype=jnp.float32) * 0.05
    b = jax.random.normal(kb, (D,), dtype=jnp.float32) * 0.1
    gain = 1.0 + 0.1 * jax.random.normal(kg, (D,), dtype=jnp.float32)
    bias = 0.1 * jax.random.normal(kbeta, (D,), dtype=jnp.float32)

    # 1) Resident-weight path: tile_t=8 forces a multi-step token grid with a
    #    clamped (non-divisible) last block; f32 end to end, tight tolerance.
    out = sublayer_connection(x, w, b, gain, bias, tile_t=8)
    out = jax.block_until_ready(out)
    ref = reference(x, w, b, gain, bias)
    assert out.shape == (B, S, D)
    assert jnp.allclose(out, ref, atol=1e-4, rtol=1e-4), "mismatch (resident path)"

    # 2) K-tiled accumulator path + bf16-fed MXU: D=256 with tk=128 gives two
    #    reduction steps; token grid of 2 tiles (one clamped).  Looser
    #    tolerance because the matmul operands are bf16 (residual/LN stay f32).
    D2 = 256
    k2 = jax.random.split(jax.random.PRNGKey(1), 5)
    x2 = jax.random.normal(k2[0], (B, S, D2), dtype=jnp.float32)
    w2 = jax.random.normal(k2[1], (D2, D2), dtype=jnp.float32) * 0.05
    b2 = jax.random.normal(k2[2], (D2,), dtype=jnp.float32) * 0.1
    g2 = 1.0 + 0.1 * jax.random.normal(k2[3], (D2,), dtype=jnp.float32)
    be2 = 0.1 * jax.random.normal(k2[4], (D2,), dtype=jnp.float32)
    out2 = sublayer_connection(x2, w2, b2, g2, be2, tk=128,
                               mxu_dtype=jnp.bfloat16)
    out2 = jax.block_until_ready(out2)
    ref2 = reference(x2, w2, b2, g2, be2)
    assert out2.shape == (B, S, D2)
    assert jnp.allclose(out2, ref2, atol=5e-2, rtol=5e-2), "mismatch (K-tiled path)"

    print("KERNEL_OK")
</pallas_src>

<mosaic_0001>
module attributes {stable_mosaic.version = 11 : i64} {
  func.func @_resident_kernel(%arg0: i32, %arg1: memref<8x128xf32, #tpu.memory_space<vmem>>, %arg2: memref<128x128xf32, #tpu.memory_space<vmem>>, %arg3: memref<1x128xf32, #tpu.memory_space<vmem>>, %arg4: memref<1x128xf32, #tpu.memory_space<vmem>>, %arg5: memref<1x128xf32, #tpu.memory_space<vmem>>, %arg6: memref<8x128xf32, #tpu.memory_space<vmem>>) attributes {dimension_semantics = [#tpu.dimension_semantics<parallel>], iteration_bounds = array<i64: 3>, scalar_prefetch = 0 : i64, scratch_operands = 0 : i64, tpu.core_type = #tpu.core_type<tc>, window_params = [{transform_indices = @transform_0, window_bounds = array<i64: 8, 128>}, {pipeline_mode = #tpu.pipeline_mode<synchronous>, transform_indices = @transform_1, window_bounds = array<i64: 128, 128>}, {pipeline_mode = #tpu.pipeline_mode<synchronous>, transform_indices = @transform_2, window_bounds = array<i64: 1, 128>}, {pipeline_mode = #tpu.pipeline_mode<synchronous>, transform_indices = @transform_3, window_bounds = array<i64: 1, 128>}, {pipeline_mode = #tpu.pipeline_mode<synchronous>, transform_indices = @transform_4, window_bounds = array<i64: 1, 128>}, {transform_indices = @transform_5, window_bounds = array<i64: 8, 128>}]} {
    %c0 = arith.constant 0 : index
    %c0_0 = arith.constant 0 : index
    %0 = vector.load %arg1[%c0, %c0_0] : memref<8x128xf32, #tpu.memory_space<vmem>>, vector<8x128xf32>
    %c0_1 = arith.constant 0 : index
    %c0_2 = arith.constant 0 : index
    %1 = vector.load %arg2[%c0_1, %c0_2] : memref<128x128xf32, #tpu.memory_space<vmem>>, vector<128x128xf32>
    %cst = arith.constant dense<0.000000e+00> : vector<8x128xf32>
    %2 = tpu.matmul %0, %1, %cst {dimension_numbers = #tpu.dot_dimension_numbers<[1], [0], [0], [1], [0, 0, 1, 1], [], []>} : vector<8x128xf32>, vector<128x128xf32>, vector<8x128xf32> -> vector<8x128xf32>
    %3 = arith.addf %0, %2 : vector<8x128xf32>
    %c0_3 = arith.constant 0 : index
    %c0_4 = arith.constant 0 : index
    %4 = vector.load %arg3[%c0_3, %c0_4] : memref<1x128xf32, #tpu.memory_space<vmem>>, vector<1x128xf32>
    %5 = vector.broadcast %4 : vector<1x128xf32> to vector<8x128xf32>
    %6 = arith.addf %3, %5 : vector<8x128xf32>
    %c0_5 = arith.constant 0 : index
    %c0_6 = arith.constant 0 : index
    %7 = vector.load %arg4[%c0_5, %c0_6] : memref<1x128xf32, #tpu.memory_space<vmem>>, vector<1x128xf32>
    %c0_7 = arith.constant 0 : index
    %c0_8 = arith.constant 0 : index
    %8 = vector.load %arg5[%c0_7, %c0_8] : memref<1x128xf32, #tpu.memory_space<vmem>>, vector<1x128xf32>
    %cst_9 = arith.constant dense<0.000000e+00> : vector<8xf32>
    %9 = vector.multi_reduction <add>, %6, %cst_9 [1] : vector<8x128xf32> to vector<8xf32>
    %10 = vector.shape_cast %9 : vector<8xf32> to vector<8x1xf32>
    %cst_10 = arith.constant 1.280000e+02 : f32
    %11 = vector.broadcast %cst_10 : f32 to vector<8x1xf32>
    %12 = arith.divf %10, %11 : vector<8x1xf32>
    %13 = vector.broadcast %12 : vector<8x1xf32> to vector<8x128xf32>
    %14 = arith.subf %6, %13 : vector<8x128xf32>
    %15 = arith.mulf %14, %14 : vector<8x128xf32>
    %cst_11 = arith.constant dense<0.000000e+00> : vector<8xf32>
    %16 = vector.multi_reduction <add>, %15, %cst_11 [1] : vector<8x128xf32> to vector<8xf32>
    %17 = vector.shape_cast %16 : vector<8xf32> to vector<8x1xf32>
    %cst_12 = arith.constant 1.270000e+02 : f32
    %18 = vector.broadcast %cst_12 : f32 to vector<8x1xf32>
    %19 = arith.divf %17, %18 : vector<8x1xf32>
    %20 = math.sqrt %19 : vector<8x1xf32>
    %cst_13 = arith.constant 9.99999997E-7 : f32
    %21 = vector.broadcast %cst_13 : f32 to vector<8x1xf32>
    %22 = arith.addf %20, %21 : vector<8x1xf32>
    %23 = tpu.reciprocal %22 {approx = true} : vector<8x1xf32> -> vector<8x1xf32>
    %24 = arith.mulf %22, %23 : vector<8x1xf32>
    %cst_14 = arith.constant 2.000000e+00 : f32
    %25 = vector.broadcast %cst_14 : f32 to vector<8x1xf32>
    %26 = arith.subf %25, %24 : vector<8x1xf32>
    %27 = arith.mulf %23, %26 : vector<8x1xf32>
    %28 = vector.broadcast %7 : vector<1x128xf32> to vector<8x128xf32>
    %29 = arith.mulf %28, %14 : vector<8x128xf32>
    %30 = vector.broadcast %27 : vector<8x1xf32> to vector<8x128xf32>
    %31 = arith.mulf %29, %30 : vector<8x128xf32>
    %32 = vector.broadcast %8 : vector<1x128xf32> to vector<8x128xf32>
    %33 = arith.addf %31, %32 : vector<8x128xf32>
    %c0_15 = arith.constant 0 : index
    %c0_16 = arith.constant 0 : index
    %34 = vector.load %arg6[%c0_15, %c0_16] : memref<8x128xf32, #tpu.memory_space<vmem>>, vector<8x128xf32>
    tpu.vector_store %arg6[%c0_15, %c0_16], %33 {strides = array<i32>} : memref<8x128xf32, #tpu.memory_space<vmem>>, vector<8x128xf32>,
    return
  }
  func.func @transform_0(%arg0: i32) -> (i32, i32) {
    %c0_i32 = arith.constant 0 : i32
    %c0_i32_0 = arith.constant 0 : i32
    return %arg0, %c0_i32 : i32, i32
  }
  func.func @transform_1(%arg0: i32) -> (i32, i32) {
    %c0_i32 = arith.constant 0 : i32
    %c0_i32_0 = arith.constant 0 : i32
    %c0_i32_1 = arith.constant 0 : i32
    return %c0_i32, %c0_i32_0 : i32, i32
  }
  func.func @transform_2(%arg0: i32) -> (i32, i32) {
    %c0_i32 = arith.constant 0 : i32
    %c0_i32_0 = arith.constant 0 : i32
    %c0_i32_1 = arith.constant 0 : i32
    return %c0_i32, %c0_i32_0 : i32, i32
  }
  func.func @transform_3(%arg0: i32) -> (i32, i32) {
    %c0_i32 = arith.constant 0 : i32
    %c0_i32_0 = arith.constant 0 : i32
    %c0_i32_1 = arith.constant 0 : i32
    return %c0_i32, %c0_i32_0 : i32, i32
  }
  func.func @transform_4(%arg0: i32) -> (i32, i32) {
    %c0_i32 = arith.constant 0 : i32
    %c0_i32_0 = arith.constant 0 : i32
    %c0_i32_1 = arith.constant 0 : i32
    return %c0_i32, %c0_i32_0 : i32, i32
  }
  func.func @transform_5(%arg0: i32) -> (i32, i32) {
    %c0_i32 = arith.constant 0 : i32
    %c0_i32_0 = arith.constant 0 : i32
    return %arg0, %c0_i32 : i32, i32
  }
}

module attributes {stable_mosaic.version = 11 : i64} {
  func.func @_resident_kernel(%arg0: i32, %arg1: memref<8x128xf32, #tpu.memory_space<vmem>>, %arg2: memref<128x128xf32, #tpu.memory_space<vmem>>, %arg3: memref<1x128xf32, #tpu.memory_space<vmem>>, %arg4: memref<1x128xf32, #tpu.memory_space<vmem>>, %arg5: memref<1x128xf32, #tpu.memory_space<vmem>>, %arg6: memref<8x128xf32, #tpu.memory_space<vmem>>) attributes {dimension_semantics = [#tpu.dimension_semantics<parallel>], iteration_bounds = array<i64: 3>, scalar_prefetch = 0 : i64, scratch_operands = 0 : i64, tpu.core_type = #tpu.core_type<tc>, window_params = [{transform_indices = @transform_0, window_bounds = array<i64: 8, 128>}, {pipeline_mode = #tpu.pipeline_mode<synchronous>, transform_indices = @transform_1, window_bounds = array<i64: 128, 128>}, {pipeline_mode = #tpu.pipeline_mode<synchronous>, transform_indices = @transform_2, window_bounds = array<i64: 1, 128>}, {pipeline_mode = #tpu.pipeline_mode<synchronous>, transform_indices = @transform_3, window_bounds = array<i64: 1, 128>}, {pipeline_mode = #tpu.pipeline_mode<synchronous>, transform_indices = @transform_4, window_bounds = array<i64: 1, 128>}, {transform_indices = @transform_5, window_bounds = array<i64: 8, 128>}]} {
    %c0 = arith.constant 0 : index
    %c0_0 = arith.constant 0 : index
    %0 = vector.load %arg1[%c0, %c0_0] : memref<8x128xf32, #tpu.memory_space<vmem>>, vector<8x128xf32>
    %c0_1 = arith.constant 0 : index
    %c0_2 = arith.constant 0 : index
    %1 = vector.load %arg2[%c0_1, %c0_2] : memref<128x128xf32, #tpu.memory_space<vmem>>, vector<128x128xf32>
    %cst = arith.constant dense<0.000000e+00> : vector<8x128xf32>
    %2 = tpu.matmul %0, %1, %cst {dimension_numbers = #tpu.dot_dimension_numbers<[1], [0], [0], [1], [0, 0, 1, 1], [], []>} : vector<8x128xf32>, vector<128x128xf32>, vector<8x128xf32> -> vector<8x128xf32>
    %3 = arith.addf %0, %2 : vector<8x128xf32>
    %c0_3 = arith.constant 0 : index
    %c0_4 = arith.constant 0 : index
    %4 = vector.load %arg3[%c0_3, %c0_4] : memref<1x128xf32, #tpu.memory_space<vmem>>, vector<1x128xf32>
    %5 = vector.broadcast %4 : vector<1x128xf32> to vector<8x128xf32>
    %6 = arith.addf %3, %5 : vector<8x128xf32>
    %c0_5 = arith.constant 0 : index
    %c0_6 = arith.constant 0 : index
    %7 = vector.load %arg4[%c0_5, %c0_6] : memref<1x128xf32, #tpu.memory_space<vmem>>, vector<1x128xf32>
    %c0_7 = arith.constant 0 : index
    %c0_8 = arith.constant 0 : index
    %8 = vector.load %arg5[%c0_7, %c0_8] : memref<1x128xf32, #tpu.memory_space<vmem>>, vector<1x128xf32>
    %cst_9 = arith.constant dense<0.000000e+00> : vector<8xf32>
    %9 = vector.multi_reduction <add>, %6, %cst_9 [1] : vector<8x128xf32> to vector<8xf32>
    %10 = vector.shape_cast %9 : vector<8xf32> to vector<8x1xf32>
    %cst_10 = arith.constant 1.280000e+02 : f32
    %11 = vector.broadcast %cst_10 : f32 to vector<8x1xf32>
    %12 = arith.divf %10, %11 : vector<8x1xf32>
    %13 = vector.broadcast %12 : vector<8x1xf32> to vector<8x128xf32>
    %14 = arith.subf %6, %13 : vector<8x128xf32>
    %15 = arith.mulf %14, %14 : vector<8x128xf32>
    %cst_11 = arith.constant dense<0.000000e+00> : vector<8xf32>
    %16 = vector.multi_reduction <add>, %15, %cst_11 [1] : vector<8x128xf32> to vector<8xf32>
    %17 = vector.shape_cast %16 : vector<8xf32> to vector<8x1xf32>
    %cst_12 = arith.constant 1.270000e+02 : f32
    %18 = vector.broadcast %cst_12 : f32 to vector<8x1xf32>
    %19 = arith.divf %17, %18 : vector<8x1xf32>
    %20 = math.sqrt %19 : vector<8x1xf32>
    %cst_13 = arith.constant 9.99999997E-7 : f32
    %21 = vector.broadcast %cst_13 : f32 to vector<8x1xf32>
    %22 = arith.addf %20, %21 : vector<8x1xf32>
    %23 = tpu.reciprocal %22 {approx = true} : vector<8x1xf32> -> vector<8x1xf32>
    %24 = arith.mulf %22, %23 : vector<8x1xf32>
    %cst_14 = arith.constant 2.000000e+00 : f32
    %25 = vector.broadcast %cst_14 : f32 to vector<8x1xf32>
    %26 = arith.subf %25, %24 : vector<8x1xf32>
    %27 = arith.mulf %23, %26 : vector<8x1xf32>
    %28 = vector.broadcast %7 : vector<1x128xf32> to vector<8x128xf32>
    %29 = arith.mulf %28, %14 : vector<8x128xf32>
    %30 = vector.broadcast %27 : vector<8x1xf32> to vector<8x128xf32>
    %31 = arith.mulf %29, %30 : vector<8x128xf32>
    %32 = vector.broadcast %8 : vector<1x128xf32> to vector<8x128xf32>
    %33 = arith.addf %31, %32 : vector<8x128xf32>
    %c0_15 = arith.constant 0 : index
    %c0_16 = arith.constant 0 : index
    %34 = vector.load %arg6[%c0_15, %c0_16] : memref<8x128xf32, #tpu.memory_space<vmem>>, vector<8x128xf32>
    tpu.vector_store %arg6[%c0_15, %c0_16], %33 {strides = array<i32>} : memref<8x128xf32, #tpu.memory_space<vmem>>, vector<8x128xf32>,
    return
  }
  func.func @transform_0(%arg0: i32) -> (i32, i32) {
    %c0_i32 = arith.constant 0 : i32
    %c0_i32_0 = arith.constant 0 : i32
    return %arg0, %c0_i32 : i32, i32
  }
  func.func @transform_1(%arg0: i32) -> (i32, i32) {
    %c0_i32 = arith.constant 0 : i32
    %c0_i32_0 = arith.constant 0 : i32
    %c0_i32_1 = arith.constant 0 : i32
    return %c0_i32, %c0_i32_0 : i32, i32
  }
  func.func @transform_2(%arg0: i32) -> (i32, i32) {
    %c0_i32 = arith.constant 0 : i32
    %c0_i32_0 = arith.constant 0 : i32
    %c0_i32_1 = arith.constant 0 : i32
    return %c0_i32, %c0_i32_0 : i32, i32
  }
  func.func @transform_3(%arg0: i32) -> (i32, i32) {
    %c0_i32 = arith.constant 0 : i32
    %c0_i32_0 = arith.constant 0 : i32
    %c0_i32_1 = arith.constant 0 : i32
    return %c0_i32, %c0_i32_0 : i32, i32
  }
  func.func @transform_4(%arg0: i32) -> (i32, i32) {
    %c0_i32 = arith.constant 0 : i32
    %c0_i32_0 = arith.constant 0 : i32
    %c0_i32_1 = arith.constant 0 : i32
    return %c0_i32, %c0_i32_0 : i32, i32
  }
  func.func @transform_5(%arg0: i32) -> (i32, i32) {
    %c0_i32 = arith.constant 0 : i32
    %c0_i32_0 = arith.constant 0 : i32
    return %arg0, %c0_i32 : i32, i32
  }
}

</mosaic_0001>

<llo_original>
// kernel: tpu_custom_call.1
$region0: #{tpu_custom_call.1}
  #allocation0 [shape = 'u32[]', space=smem, size = 0x4, offset = 0x4, fixed_abs, tag = 'smem constant byte address 0x4 - core index']
  #allocation1 [shape = 'u32[72,128]{1,0:T(1,128)}', space=vmem, size = 0x9000, scoped, tag = 'internal scratch']
  %s0 = inlined_call_operand.hbm [shape: f32[18,128], index: 0, kind: input, shape index: {}]
  %s1 = inlined_call_operand.hbm [shape: f32[128,128], index: 1, kind: input, shape index: {}]
  %s2 = inlined_call_operand.vmem [shape: f32[1,128], index: 2, kind: input, shape index: {}]
  %s3 = inlined_call_operand.vmem [shape: f32[1,128], index: 3, kind: input, shape index: {}]
  %s4 = inlined_call_operand.vmem [shape: f32[1,128], index: 4, kind: input, shape index: {}]
  %s5 = inlined_call_operand.hbm [shape: f32[18,128], index: 5, kind: output, shape index: {}]
  %s6 = sld [smem:[#allocation0]]
  $region61: #{tpu_custom_call.1} parent=0
    _
  %s8 = ssub.s32 1, %s6
  %s9 = scalar_select 0, %s8, %s6
  $region1: #{tpu_custom_call.1} parent=0
    #allocation2 [shape = 'u8[8192]{0}', space=vmem, size = 0x2000, scoped, tag = 'input window, operand 0']
    #allocation3 [shape = 's32[2]{0}', space=sflag, size = 0x8, scoped, tag = 'scoped memory for tpu_custom_call.1']
    #allocation4 [shape = 's32[2]{0}', space=sflag, size = 0x8, scoped, tag = 'scoped memory for tpu_custom_call.1']
    #allocation5 [shape = 'u8[65536]{0}', space=vmem, size = 0x10000, scoped, tag = 'input window, operand 1, single buffered']
    #allocation6 [shape = 's32[1]{0}', space=sflag, size = 0x4, scoped, tag = 'scoped memory for tpu_custom_call.1']
    #allocation7 [shape = 'u8[8192]{0}', space=vmem, size = 0x2000, scoped, tag = 'output window, operand 0']
    %10 = vsyncpa [#allocation3], 0
    %s11 = scalar_lea.sflag [#allocation3], 1
    %12 = vsyncpa %s11, 0
    %13 = vsyncpa [#allocation6], 0
    %14 = vsyncpa [#allocation4], 0
    %s15 = scalar_lea.sflag [#allocation4], 1
    %16 = vsyncpa %s15, 0
    loop: start=0, step=1, limit=5
    $region2: #{tpu_custom_call.1} parent=1 // loop_pre_header
      _
    $region3: #{tpu_custom_call.1} parent=1 // loop_header
      %s18 = sphi 0, %s22
      %p19 = scmp.ge.s32.totalorder %s18, 5
      %s28 = sphi 0, %s30
      %s31 = sphi 0, %s28
      %s32 = sphi 0, %s31
      %s48 = sphi 0, %s32
      %s52 = sphi 0, %s52
      %s54 = sphi 0, %s52
      %s55 = sphi 0, %s54
      %s69 = sphi 0, %s55
      %s73 = sphi 0, %s73
      %s75 = sphi 0, %s73
      %s76 = sphi 0, %s75
      %s90 = sphi 0, %s76
      %s94 = sphi 0, %s94
      %s96 = sphi 0, %s94
      %s97 = sphi 0, %s96
      %s111 = sphi 0, %s97
      %s115 = sphi 0, %s115
      %s117 = sphi 0, %s115
      %s118 = sphi 0, %s117
      %s132 = sphi 0, %s118
      %s138 = sphi 0, %s140
      %s141 = sphi 0, %s138
      %s142 = sphi 0, %s141
      %s158 = sphi 0, %s142
    $region4: #{tpu_custom_call.1} parent=1 // loop_header_branch
      %21 = sbr.rel (%p19) target = $region8
    $region5: #{tpu_custom_call.1} parent=1 // loop_body
      %s23 = ssub.s32 %s18, 1
      %s24 = ssub.s32 %s18, 2
      %s25 = sadd.s32 %s18, 1
      %s26 = ssub.s32 %s18, %s25
      %p27 = scmp.eq.s32.totalorder %s26, 0
      %s29 = sadd.s32 %s28, 1
      %s30 = scalar_select %p27, %s28, %s29
      %p33 = pneg %p27
      %p34 = scmp.eq.s32.totalorder %s18, 2
      %p35 = por %p33, %p34
      %p36 = scmp.ne.s32.totalorder %s28, %s31
      %p37 = scmp.eq.s32.totalorder %s18, 0
      %p38 = por %p36, %p37
      %p39 = scmp.ne.s32.totalorder %s28, %s31
      %p40 = scmp.eq.s32.totalorder %s23, 2
      %p41 = por %p39, %p40
      %p42 = scmp.ne.s32.totalorder %s31, %s32
      %p43 = scmp.eq.s32.totalorder %s23, 0
      %p44 = por %p42, %p43
      %p45 = scmp.ne.s32.totalorder %s31, %s32
      %p46 = scmp.eq.s32.totalorder %s24, 2
      %p47 = por %p45, %p46
      %p49 = scmp.ne.s32.totalorder %s32, %s48
      %p50 = scmp.eq.s32.totalorder %s24, 0
      %p51 = por %p49, %p50
      %s53 = sadd.s32 %s52, 1
      %p56 = scmp.eq.s32.totalorder %s18, 2
      %p57 = scmp.ne.s32.totalorder %s52, %s54
      %p58 = scmp.eq.s32.totalorder %s18, 0
      %p59 = por %p57, %p58
      %p60 = scmp.ne.s32.totalorder %s52, %s54
      %p61 = scmp.eq.s32.totalorder %s23, 2
      %p62 = por %p60, %p61
      %p63 = scmp.ne.s32.totalorder %s54, %s55
      %p64 = scmp.eq.s32.totalorder %s23, 0
      %p65 = por %p63, %p64
      %p66 = scmp.ne.s32.totalorder %s54, %s55
      %p67 = scmp.eq.s32.totalorder %s24, 2
      %p68 = por %p66, %p67
      %p70 = scmp.ne.s32.totalorder %s55, %s69
      %p71 = scmp.eq.s32.totalorder %s24, 0
      %p72 = por %p70, %p71
      %s74 = sadd.s32 %s73, 1
      %p77 = scmp.eq.s32.totalorder %s18, 2
      %p78 = scmp.ne.s32.totalorder %s73, %s75
      %p79 = scmp.eq.s32.totalorder %s18, 0
      %p80 = por %p78, %p79
      %p81 = scmp.ne.s32.totalorder %s73, %s75
      %p82 = scmp.eq.s32.totalorder %s23, 2
      %p83 = por %p81, %p82
      %p84 = scmp.ne.s32.totalorder %s75, %s76
      %p85 = scmp.eq.s32.totalorder %s23, 0
      %p86 = por %p84, %p85
      %p87 = scmp.ne.s32.totalorder %s75, %s76
      %p88 = scmp.eq.s32.totalorder %s24, 2
      %p89 = por %p87, %p88
      %p91 = scmp.ne.s32.totalorder %s76, %s90
      %p92 = scmp.eq.s32.totalorder %s24, 0
      %p93 = por %p91, %p92
      %s95 = sadd.s32 %s94, 1
      %p98 = scmp.eq.s32.totalorder %s18, 2
      %p99 = scmp.ne.s32.totalorder %s94, %s96
      %p100 = scmp.eq.s32.totalorder %s18, 0
      %p101 = por %p99, %p100
      %p102 = scmp.ne.s32.totalorder %s94, %s96
      %p103 = scmp.eq.s32.totalorder %s23, 2
      %p104 = por %p102, %p103
      %p105 = scmp.ne.s32.totalorder %s96, %s97
      %p106 = scmp.eq.s32.totalorder %s23, 0
      %p107 = por %p105, %p106
      %p108 = scmp.ne.s32.totalorder %s96, %s97
      %p109 = scmp.eq.s32.totalorder %s24, 2
      %p110 = por %p108, %p109
      %p112 = scmp.ne.s32.totalorder %s97, %s111
      %p113 = scmp.eq.s32.totalorder %s24, 0
      %p114 = por %p112, %p113
      %s116 = sadd.s32 %s115, 1
      %p119 = scmp.eq.s32.totalorder %s18, 2
      %p120 = scmp.ne.s32.totalorder %s115, %s117
      %p121 = scmp.eq.s32.totalorder %s18, 0
      %p122 = por %p120, %p121
      %p123 = scmp.ne.s32.totalorder %s115, %s117
      %p124 = scmp.eq.s32.totalorder %s23, 2
      %p125 = por %p123, %p124
      %p126 = scmp.ne.s32.totalorder %s117, %s118
      %p127 = scmp.eq.s32.totalorder %s23, 0
      %p128 = por %p126, %p127
      %p129 = scmp.ne.s32.totalorder %s117, %s118
      %p130 = scmp.eq.s32.totalorder %s24, 2
      %p131 = por %p129, %p130
      %p133 = scmp.ne.s32.totalorder %s118, %s132
      %p134 = scmp.eq.s32.totalorder %s24, 0
      %p135 = por %p133, %p134
      %s136 = ssub.s32 %s18, %s25
      %p137 = scmp.eq.s32.totalorder %s136, 0
      %s139 = sadd.s32 %s138, 1
      %s140 = scalar_select %p137, %s138, %s139
      %p143 = pneg %p137
      %p144 = scmp.eq.s32.totalorder %s18, 2
      %p145 = por %p143, %p144
      %p146 = scmp.ne.s32.totalorder %s138, %s141
      %p147 = scmp.eq.s32.totalorder %s18, 0
      %p148 = por %p146, %p147
      %p149 = scmp.ne.s32.totalorder %s138, %s141
      %p150 = scmp.eq.s32.totalorder %s23, 2
      %p151 = por %p149, %p150
      %p152 = scmp.ne.s32.totalorder %s141, %s142
      %p153 = scmp.eq.s32.totalorder %s23, 0
      %p154 = por %p152, %p153
      %p155 = scmp.ne.s32.totalorder %s141, %s142
      %p156 = scmp.eq.s32.totalorder %s24, 2
      %p157 = por %p155, %p156
      %p159 = scmp.ne.s32.totalorder %s142, %s158
      %p160 = scmp.eq.s32.totalorder %s24, 0
      %p161 = por %p159, %p160
      %p162 = scmp.le.s32.totalorder 1, %s18
      %p163 = scmp.lt.s32.totalorder %s18, 4
      %p164 = pnand %p162, %p163
      %p165 = pneg %p164
      // Predicated region
      $region9: #{tpu_custom_call.1} parent=5 // pred_check
        _
      $region10: #{tpu_custom_call.1} parent=5 // pred_check_branch
        %167 = sbr.rel (%p164) target = $region12
      $region11: #{tpu_custom_call.1} parent=5 // pred_region
        %s168 = ssub.s32 %s18, 1
        // Predicated region
        $region13: #{tpu_custom_call.1} parent=11 // pred_check
          %p169 = pneg %p65
        $region14: #{tpu_custom_call.1} parent=11 // pred_check_branch
          %171 = sbr.rel (%p169) target = $region16
        $region15: #{tpu_custom_call.1} parent=11 // pred_region
          %173 = vsyncadd [#allocation6], 0
          %s174 = sshll.u32 %s1, 4
          %s175 = int_to_ptr.hbm [resolvable:$true] %s174
          %s176 = sshll.u32 [#allocation5], 4
          %s177 = int_to_ptr.vmem [resolvable:$true] %s176
          %182 = dma.hbm_to_vmem [thread:$0]  %s175, 2048, %s177, [#allocation6], 128, 128, 8
        $region16: #{tpu_custom_call.1} parent=11 // pred_fallthru
          _
        // Predicated region
        $region17: #{tpu_custom_call.1} parent=11 // pred_check
          %p183 = pneg %p86
        $region18: #{tpu_custom_call.1} parent=11 // pred_check_branch
          %185 = sbr.rel (%p183) target = $region20
        $region19: #{tpu_custom_call.1} parent=11 // pred_region
          _
        $region20: #{tpu_custom_call.1} parent=11 // pred_fallthru
          _
        // Predicated region
        $region21: #{tpu_custom_call.1} parent=11 // pred_check
          %p186 = pneg %p107
        $region22: #{tpu_custom_call.1} parent=11 // pred_check_branch
          %188 = sbr.rel (%p186) target = $region24
        $region23: #{tpu_custom_call.1} parent=11 // pred_region
          _
        $region24: #{tpu_custom_call.1} parent=11 // pred_fallthru
          _
        // Predicated region
        $region25: #{tpu_custom_call.1} parent=11 // pred_check
          %p189 = pneg %p128
        $region26: #{tpu_custom_call.1} parent=11 // pred_check_branch
          %191 = sbr.rel (%p189) target = $region28
        $region27: #{tpu_custom_call.1} parent=11 // pred_region
          _
        $region28: #{tpu_custom_call.1} parent=11 // pred_fallthru
          _
      $region12: #{tpu_custom_call.1} parent=5 // pred_fallthru
        _
      %p192 = scmp.lt.s32.totalorder %s18, 3
      // Predicated region
      $region29: #{tpu_custom_call.1} parent=5 // pred_check
        %p193 = pneg %p192
      $region30: #{tpu_custom_call.1} parent=5 // pred_check_branch
        %195 = sbr.rel (%p193) target = $region32
      $region31: #{tpu_custom_call.1} parent=5 // pred_region
        // Predicated region
        $region33: #{tpu_custom_call.1} parent=31 // pred_check
          %p196 = pneg %p38
        $region34: #{tpu_custom_call.1} parent=31 // pred_check_branch
          %198 = sbr.rel (%p196) target = $region36
        $region35: #{tpu_custom_call.1} parent=31 // pred_region
          %s199 = sand.u32 %s28, 1
          %s200 = scalar_lea.sflag [#allocation3], %s199
          %s201 = sand.u32 %s28, 1
          %s202 = smul.addr %s201, 8
          %s203 = scalar_lea.vmem [#allocation2], %s202
          %205 = vsyncadd %s200, 0
          %s206 = smul.addr %s18, 8
          %s207 = scalar_lea.hbm %s0, %s206
          %s209 = sshll.u32 %s207, 4
          %s210 = int_to_ptr.hbm [resolvable:$true] %s209
          %s211 = sshll.u32 %s203, 4
          %s212 = int_to_ptr.vmem [resolvable:$true] %s211
          %214 = dma.hbm_to_vmem [thread:$0]  %s210, 128, %s212, %s200
        $region36: #{tpu_custom_call.1} parent=31 // pred_fallthru
          _
      $region32: #{tpu_custom_call.1} parent=5 // pred_fallthru
        _
      %p215 = scmp.le.s32.totalorder 1, %s18
      %p216 = scmp.lt.s32.totalorder %s18, 4
      %p217 = pnand %p215, %p216
      %p218 = pneg %p217
      // Predicated region
      $region37: #{tpu_custom_call.1} parent=5 // pred_check
        _
      $region38: #{tpu_custom_call.1} parent=5 // pred_check_branch
        %220 = sbr.rel (%p217) target = $region40
      $region39: #{tpu_custom_call.1} parent=5 // pred_region
        %s221 = ssub.s32 %s18, 1
        %s222 = sand.u32 %s31, 1
        %s223 = scalar_lea.sflag [#allocation3], %s222
        %s224 = sand.u32 %s31, 1
        %s225 = smul.addr %s224, 8
        %s226 = scalar_lea.vmem [#allocation2], %s225
        // Predicated region
        $region41: #{tpu_custom_call.1} parent=39 // pred_check
          %p227 = pneg %p44
        $region42: #{tpu_custom_call.1} parent=39 // pred_check_branch
          %229 = sbr.rel (%p227) target = $region44
        $region43: #{tpu_custom_call.1} parent=39 // pred_region
          %231 = dma.done %s223, 128
        $region44: #{tpu_custom_call.1} parent=39 // pred_fallthru
          _
        // Predicated region
        $region45: #{tpu_custom_call.1} parent=39 // pred_check
          %p232 = pneg %p65
        $region46: #{tpu_custom_call.1} parent=39 // pred_check_branch
          %234 = sbr.rel (%p232) target = $region48
        $region47: #{tpu_custom_call.1} parent=39 // pred_region
          %236 = dma.done [#allocation6], 2048
        $region48: #{tpu_custom_call.1} parent=39 // pred_fallthru
          _
        %s237 = sand.u32 %s31, 1
        %s238 = scalar_lea.sflag [#allocation3], %s237
        %s239 = sand.u32 %s31, 1
        %s240 = smul.addr %s239, 8
        %s241 = scalar_lea.vmem [#allocation2], %s240
        %p242 = pneg %p44
        %p243 = pneg %p41
        %p244 = pneg %p65
        %p245 = pneg %p62
        %p246 = pneg %p86
        %p247 = pneg %p83
        %p248 = pneg %p107
        %p249 = pneg %p104
        %p250 = pneg %p128
        %p251 = pneg %p125
        %p252 = pneg %p154
        %p253 = pneg %p151
        %s254 = sand.u32 %s141, 1
        %s255 = scalar_lea.sflag [#allocation4], %s254
        %s256 = sand.u32 %s141, 1
        %s257 = smul.addr %s256, 8
        %s258 = scalar_lea.vmem [#allocation7], %s257
        %v259 = vld [vmem:[%s226] sm:$0xff]
        %v260 = vld [vmem:[#allocation5] sm:$0xff]
        %v261 = vld [vmem:[#allocation5 + $0x8] sm:$0xff]
        %v262 = vld [vmem:[#allocation5 + $0x10] sm:$0xff]
        %v263 = vld [vmem:[#allocation5 + $0x18] sm:$0xff]
        %v264 = vld [vmem:[#allocation5 + $0x20] sm:$0xff]
        %v265 = vld [vmem:[#allocation5 + $0x28] sm:$0xff]
        %v266 = vld [vmem:[#allocation5 + $0x30] sm:$0xff]
        %v267 = vld [vmem:[#allocation5 + $0x38] sm:$0xff]
        %v268 = vld [vmem:[#allocation5 + $0x40] sm:$0xff]
        %v269 = vld [vmem:[#allocation5 + $0x48] sm:$0xff]
        %v270 = vld [vmem:[#allocation5 + $0x50] sm:$0xff]
        %v271 = vld [vmem:[#allocation5 + $0x58] sm:$0xff]
        %v272 = vld [vmem:[#allocation5 + $0x60] sm:$0xff]
        %v273 = vld [vmem:[#allocation5 + $0x68] sm:$0xff]
        %v274 = vld [vmem:[#allocation5 + $0x70] sm:$0xff]
        %v275 = vld [vmem:[#allocation5 + $0x78] sm:$0xff]
        %276 = vmatpush.msra.mxu0 %v275
        %277 = vmatpush.msra.mxu0 %v274
        %278 = vmatpush.msra.mxu0 %v273
        %279 = vmatpush.msra.mxu0 %v272
        %280 = vmatpush.msra.mxu0 %v271
        %281 = vmatpush.msra.mxu0 %v270
        %282 = vmatpush.msra.mxu0 %v269
        %283 = vmatpush.msra.mxu0 %v268
        %284 = vmatpush.msra.mxu0 %v267
        %285 = vmatpush.msra.mxu0 %v266
        %286 = vmatpush.msra.mxu0 %v265
        %287 = vmatpush.msra.mxu0 %v264
        %288 = vmatpush.msra.mxu0 %v263
        %289 = vmatpush.msra.mxu0 %v262
        %290 = vmatpush.msra.mxu0 %v261
        %291 = vmatpush.msra.mxu0 %v260
        %292 = vmatmul.f32.gmra.mxu0 %v259
        %v293 = vpop.f32.mrf.mxu0
        %v294 = vadd.f32 0.0, %v293
        %295 = vdwg.mxu0
        %v296 = vadd.f32 %v259, %v294
        %v297 = vld [vmem:[%s2] sm:$0x1]
        %v299 = vperm.slane %v297, 0
        %v301 = vadd.f32 %v296, %v299
        %v302 = vld [vmem:[%s3] sm:$0x1]
        %v303 = vld [vmem:[%s4] sm:$0x1]
        %304 = vadd.xlane.f32.xlu0 %v301
        %v305 = vpop.xlane.xlu0 %304
        %v306 = vrcp.pop 128.0
        %v307 = vmul.f32 128.0, %v306
        %v308 = vsub.f32 1.0, %v307
        %v309 = vmul.f32 %v306, %v308
        %v310 = vadd.f32 %v306, %v309
        %vm311 = vweird.f32 %v306
        %v312 = vsel %vm311, %v306, %v310
        %v313 = vmul.f32 %v305, %v312
        %v314 = vsub.f32 %v301, %v313
        %v315 = vmul.f32 %v314, %v314
        %316 = vadd.xlane.f32.xlu0 %v315
        %v317 = vpop.xlane.xlu0 %316
        %v318 = vrcp.pop 127.0
        %v319 = vmul.f32 127.0, %v318
        %v320 = vsub.f32 1.0, %v319
        %v321 = vmul.f32 %v318, %v320
        %v322 = vadd.f32 %v318, %v321
        %vm323 = vweird.f32 %v318
        %v324 = vsel %vm323, %v318, %v322
        %v325 = vmul.f32 %v317, %v324
        %v326 = vrsqrt.pop %v325
        %v327 = vmul.f32 %v326, %v325
        %v328 = vmul.f32 %v327, %v326
        %v329 = vmul.f32 0.5, %v328
        %v330 = vsub.f32 1.5, %v329
        %v331 = vmul.f32 %v326, %v330
        %v332 = vmul.f32 %v325, %v331
        %vm333 = vcmp.eq.f32.partialorder %v325, inf
        %v334 = vsel %vm333, %v325, %v332
        %vm335 = vcmp.eq.f32.partialorder %v325, 0.0
        %v336 = vand.u32 %v325, 2147483648
        %v337 = vsel %vm335, %v336, %v334
        %v338 = vadd.f32 %v337, 1e-06
        %v339 = vrcp.pop %v338
        %v340 = vmul.f32 %v338, %v339
        %v341 = vsub.f32 2.0, %v340
        %v342 = vmul.f32 %v339, %v341
        %v344 = vperm.slane %v302, 0
        %v346 = vmul.f32 %v344, %v314
        %v347 = vmul.f32 %v346, %v342
        %v349 = vperm.slane %v303, 0
        %v351 = vadd.f32 %v347, %v349
        %352 = vst [vmem:[%s258] sm:$0xff] %v351
        %s353 = sand.u32 %s141, 1
        %s354 = scalar_lea.sflag [#allocation4], %s353
        %s355 = sand.u32 %s141, 1
        %s356 = smul.addr %s355, 8
        %s357 = scalar_lea.vmem [#allocation7], %s356
        // Predicated region
        $region49: #{tpu_custom_call.1} parent=39 // pred_check
          %p358 = pneg %p151
        $region50: #{tpu_custom_call.1} parent=39 // pred_check_branch
          %360 = sbr.rel (%p358) target = $region52
        $region51: #{tpu_custom_call.1} parent=39 // pred_region
          %362 = vsyncadd %s354, 0
          %s363 = smul.addr %s23, 8
          %s364 = scalar_lea.hbm %s5, %s363
          %s366 = sshll.u32 %s357, 4
          %s367 = int_to_ptr.vmem [resolvable:$true] %s366
          %s368 = sshll.u32 %s364, 4
          %s369 = int_to_ptr.hbm [resolvable:$true] %s368
          %371 = dma.vmem_to_hbm [thread:$0]  %s367, 128, %s369, %s354
        $region52: #{tpu_custom_call.1} parent=39 // pred_fallthru
          _
      $region40: #{tpu_custom_call.1} parent=5 // pred_fallthru
        _
      %p372 = scmp.le.s32.totalorder 2, %s18
      // Predicated region
      $region53: #{tpu_custom_call.1} parent=5 // pred_check
        %p373 = pneg %p372
      $region54: #{tpu_custom_call.1} parent=5 // pred_check_branch
        %375 = sbr.rel (%p373) target = $region56
      $region55: #{tpu_custom_call.1} parent=5 // pred_region
        %s376 = ssub.s32 %s18, 2
        // Predicated region
        $region57: #{tpu_custom_call.1} parent=55 // pred_check
          %p377 = pneg %p157
        $region58: #{tpu_custom_call.1} parent=55 // pred_check_branch
          %379 = sbr.rel (%p377) target = $region60
        $region59: #{tpu_custom_call.1} parent=55 // pred_region
          %s380 = sand.u32 %s142, 1
          %s381 = scalar_lea.sflag [#allocation4], %s380
          %s382 = sand.u32 %s142, 1
          %s383 = smul.addr %s382, 8
          %s384 = scalar_lea.vmem [#allocation7], %s383
          %386 = dma.done %s381, 128
        $region60: #{tpu_custom_call.1} parent=55 // pred_fallthru
          _
      $region56: #{tpu_custom_call.1} parent=5 // pred_fallthru
        _
    $region6: #{tpu_custom_call.1} parent=1 // loop_footer
      %s22 = sadd.s32 1, %s18
    $region7: #{tpu_custom_call.1} parent=1 // loop_footer_branch
      %17 = sbr.rel target = $region3
    $region8: #{tpu_custom_call.1} parent=1 // loop_exit
      _
    %387 = vsyncpa [#allocation3], 1
    %s388 = scalar_lea.sflag [#allocation3], 1
    %389 = vsyncpa %s388, 1
    %390 = vsyncpa [#allocation6], 1
    %391 = vsyncpa [#allocation4], 1
    %s392 = scalar_lea.sflag [#allocation4], 1
    %393 = vsyncpa %s392, 1

// kernel: tpu_custom_call.1
$region0: #{tpu_custom_call.1}
  #allocation0 [shape = 'u32[]', space=smem, size = 0x4, offset = 0x4, fixed_abs, tag = 'smem constant byte address 0x4 - core index']
  #allocation1 [shape = 'u32[72,128]{1,0:T(1,128)}', space=vmem, size = 0x9000, scoped, tag = 'internal scratch']
  %s0 = inlined_call_operand.hbm [shape: f32[18,128], index: 0, kind: input, shape index: {}]
  %s1 = inlined_call_operand.hbm [shape: f32[128,128], index: 1, kind: input, shape index: {}]
  %s2 = inlined_call_operand.vmem [shape: f32[1,128], index: 2, kind: input, shape index: {}]
  %s3 = inlined_call_operand.vmem [shape: f32[1,128], index: 3, kind: input, shape index: {}]
  %s4 = inlined_call_operand.vmem [shape: f32[1,128], index: 4, kind: input, shape index: {}]
  %s5 = inlined_call_operand.hbm [shape: f32[18,128], index: 5, kind: output, shape index: {}]
  %s6 = sld [smem:[#allocation0]]
  $region61: #{tpu_custom_call.1} parent=0
    _
  %s8 = ssub.s32 1, %s6
  %s9 = scalar_select 0, %s8, %s6
  $region1: #{tpu_custom_call.1} parent=0
    #allocation2 [shape = 'u8[8192]{0}', space=vmem, size = 0x2000, scoped, tag = 'input window, operand 0']
    #allocation3 [shape = 's32[2]{0}', space=sflag, size = 0x8, scoped, tag = 'scoped memory for tpu_custom_call.1']
    #allocation4 [shape = 's32[2]{0}', space=sflag, size = 0x8, scoped, tag = 'scoped memory for tpu_custom_call.1']
    #allocation5 [shape = 'u8[65536]{0}', space=vmem, size = 0x10000, scoped, tag = 'input window, operand 1, single buffered']
    #allocation6 [shape = 's32[1]{0}', space=sflag, size = 0x4, scoped, tag = 'scoped memory for tpu_custom_call.1']
    #allocation7 [shape = 'u8[8192]{0}', space=vmem, size = 0x2000, scoped, tag = 'output window, operand 0']
    %10 = vsyncpa [#allocation3], 0
    %s11 = scalar_lea.sflag [#allocation3], 1
    %12 = vsyncpa %s11, 0
    %13 = vsyncpa [#allocation6], 0
    %14 = vsyncpa [#allocation4], 0
    %s15 = scalar_lea.sflag [#allocation4], 1
    %16 = vsyncpa %s15, 0
    loop: start=0, step=1, limit=5
    $region2: #{tpu_custom_call.1} parent=1 // loop_pre_header
      _
    $region3: #{tpu_custom_call.1} parent=1 // loop_header
      %s18 = sphi 0, %s22
      %p19 = scmp.ge.s32.totalorder %s18, 5
      %s28 = sphi 0, %s30
      %s31 = sphi 0, %s28
      %s32 = sphi 0, %s31
      %s48 = sphi 0, %s32
      %s52 = sphi 0, %s52
      %s54 = sphi 0, %s52
      %s55 = sphi 0, %s54
      %s69 = sphi 0, %s55
      %s73 = sphi 0, %s73
      %s75 = sphi 0, %s73
      %s76 = sphi 0, %s75
      %s90 = sphi 0, %s76
      %s94 = sphi 0, %s94
      %s96 = sphi 0, %s94
      %s97 = sphi 0, %s96
      %s111 = sphi 0, %s97
      %s115 = sphi 0, %s115
      %s117 = sphi 0, %s115
      %s118 = sphi 0, %s117
      %s132 = sphi 0, %s118
      %s138 = sphi 0, %s140
      %s141 = sphi 0, %s138
      %s142 = sphi 0, %s141
      %s158 = sphi 0, %s142
    $region4: #{tpu_custom_call.1} parent=1 // loop_header_branch
      %21 = sbr.rel (%p19) target = $region8
    $region5: #{tpu_custom_call.1} parent=1 // loop_body
      %s23 = ssub.s32 %s18, 1
      %s24 = ssub.s32 %s18, 2
      %s25 = sadd.s32 %s18, 1
      %s26 = ssub.s32 %s18, %s25
      %p27 = scmp.eq.s32.totalorder %s26, 0
      %s29 = sadd.s32 %s28, 1
      %s30 = scalar_select %p27, %s28, %s29
      %p33 = pneg %p27
      %p34 = scmp.eq.s32.totalorder %s18, 2
      %p35 = por %p33, %p34
      %p36 = scmp.ne.s32.totalorder %s28, %s31
      %p37 = scmp.eq.s32.totalorder %s18, 0
      %p38 = por %p36, %p37
      %p39 = scmp.ne.s32.totalorder %s28, %s31
      %p40 = scmp.eq.s32.totalorder %s23, 2
      %p41 = por %p39, %p40
      %p42 = scmp.ne.s32.totalorder %s31, %s32
      %p43 = scmp.eq.s32.totalorder %s23, 0
      %p44 = por %p42, %p43
      %p45 = scmp.ne.s32.totalorder %s31, %s32
      %p46 = scmp.eq.s32.totalorder %s24, 2
      %p47 = por %p45, %p46
      %p49 = scmp.ne.s32.totalorder %s32, %s48
      %p50 = scmp.eq.s32.totalorder %s24, 0
      %p51 = por %p49, %p50
      %s53 = sadd.s32 %s52, 1
      %p56 = scmp.eq.s32.totalorder %s18, 2
      %p57 = scmp.ne.s32.totalorder %s52, %s54
      %p58 = scmp.eq.s32.totalorder %s18, 0
      %p59 = por %p57, %p58
      %p60 = scmp.ne.s32.totalorder %s52, %s54
      %p61 = scmp.eq.s32.totalorder %s23, 2
      %p62 = por %p60, %p61
      %p63 = scmp.ne.s32.totalorder %s54, %s55
      %p64 = scmp.eq.s32.totalorder %s23, 0
      %p65 = por %p63, %p64
      %p66 = scmp.ne.s32.totalorder %s54, %s55
      %p67 = scmp.eq.s32.totalorder %s24, 2
      %p68 = por %p66, %p67
      %p70 = scmp.ne.s32.totalorder %s55, %s69
      %p71 = scmp.eq.s32.totalorder %s24, 0
      %p72 = por %p70, %p71
      %s74 = sadd.s32 %s73, 1
      %p77 = scmp.eq.s32.totalorder %s18, 2
      %p78 = scmp.ne.s32.totalorder %s73, %s75
      %p79 = scmp.eq.s32.totalorder %s18, 0
      %p80 = por %p78, %p79
      %p81 = scmp.ne.s32.totalorder %s73, %s75
      %p82 = scmp.eq.s32.totalorder %s23, 2
      %p83 = por %p81, %p82
      %p84 = scmp.ne.s32.totalorder %s75, %s76
      %p85 = scmp.eq.s32.totalorder %s23, 0
      %p86 = por %p84, %p85
      %p87 = scmp.ne.s32.totalorder %s75, %s76
      %p88 = scmp.eq.s32.totalorder %s24, 2
      %p89 = por %p87, %p88
      %p91 = scmp.ne.s32.totalorder %s76, %s90
      %p92 = scmp.eq.s32.totalorder %s24, 0
      %p93 = por %p91, %p92
      %s95 = sadd.s32 %s94, 1
      %p98 = scmp.eq.s32.totalorder %s18, 2
      %p99 = scmp.ne.s32.totalorder %s94, %s96
      %p100 = scmp.eq.s32.totalorder %s18, 0
      %p101 = por %p99, %p100
      %p102 = scmp.ne.s32.totalorder %s94, %s96
      %p103 = scmp.eq.s32.totalorder %s23, 2
      %p104 = por %p102, %p103
      %p105 = scmp.ne.s32.totalorder %s96, %s97
      %p106 = scmp.eq.s32.totalorder %s23, 0
      %p107 = por %p105, %p106
      %p108 = scmp.ne.s32.totalorder %s96, %s97
      %p109 = scmp.eq.s32.totalorder %s24, 2
      %p110 = por %p108, %p109
      %p112 = scmp.ne.s32.totalorder %s97, %s111
      %p113 = scmp.eq.s32.totalorder %s24, 0
      %p114 = por %p112, %p113
      %s116 = sadd.s32 %s115, 1
      %p119 = scmp.eq.s32.totalorder %s18, 2
      %p120 = scmp.ne.s32.totalorder %s115, %s117
      %p121 = scmp.eq.s32.totalorder %s18, 0
      %p122 = por %p120, %p121
      %p123 = scmp.ne.s32.totalorder %s115, %s117
      %p124 = scmp.eq.s32.totalorder %s23, 2
      %p125 = por %p123, %p124
      %p126 = scmp.ne.s32.totalorder %s117, %s118
      %p127 = scmp.eq.s32.totalorder %s23, 0
      %p128 = por %p126, %p127
      %p129 = scmp.ne.s32.totalorder %s117, %s118
      %p130 = scmp.eq.s32.totalorder %s24, 2
      %p131 = por %p129, %p130
      %p133 = scmp.ne.s32.totalorder %s118, %s132
      %p134 = scmp.eq.s32.totalorder %s24, 0
      %p135 = por %p133, %p134
      %s136 = ssub.s32 %s18, %s25
      %p137 = scmp.eq.s32.totalorder %s136, 0
      %s139 = sadd.s32 %s138, 1
      %s140 = scalar_select %p137, %s138, %s139
      %p143 = pneg %p137
      %p144 = scmp.eq.s32.totalorder %s18, 2
      %p145 = por %p143, %p144
      %p146 = scmp.ne.s32.totalorder %s138, %s141
      %p147 = scmp.eq.s32.totalorder %s18, 0
      %p148 = por %p146, %p147
      %p149 = scmp.ne.s32.totalorder %s138, %s141
      %p150 = scmp.eq.s32.totalorder %s23, 2
      %p151 = por %p149, %p150
      %p152 = scmp.ne.s32.totalorder %s141, %s142
      %p153 = scmp.eq.s32.totalorder %s23, 0
      %p154 = por %p152, %p153
      %p155 = scmp.ne.s32.totalorder %s141, %s142
      %p156 = scmp.eq.s32.totalorder %s24, 2
      %p157 = por %p155, %p156
      %p159 = scmp.ne.s32.totalorder %s142, %s158
      %p160 = scmp.eq.s32.totalorder %s24, 0
      %p161 = por %p159, %p160
      %p162 = scmp.le.s32.totalorder 1, %s18
      %p163 = scmp.lt.s32.totalorder %s18, 4
      %p164 = pnand %p162, %p163
      %p165 = pneg %p164
      // Predicated region
      $region9: #{tpu_custom_call.1} parent=5 // pred_check
        _
      $region10: #{tpu_custom_call.1} parent=5 // pred_check_branch
        %167 = sbr.rel (%p164) target = $region12
      $region11: #{tpu_custom_call.1} parent=5 // pred_region
        %s168 = ssub.s32 %s18, 1
        // Predicated region
        $region13: #{tpu_custom_call.1} parent=11 // pred_check
          %p169 = pneg %p65
        $region14: #{tpu_custom_call.1} parent=11 // pred_check_branch
          %171 = sbr.rel (%p169) target = $region16
        $region15: #{tpu_custom_call.1} parent=11 // pred_region
          %173 = vsyncadd [#allocation6], 0
          %s174 = sshll.u32 %s1, 4
          %s175 = int_to_ptr.hbm [resolvable:$true] %s174
          %s176 = sshll.u32 [#allocation5], 4
          %s177 = int_to_ptr.vmem [resolvable:$true] %s176
          %182 = dma.hbm_to_vmem [thread:$0]  %s175, 2048, %s177, [#allocation6], 128, 128, 8
        $region16: #{tpu_custom_call.1} parent=11 // pred_fallthru
          _
        // Predicated region
        $region17: #{tpu_custom_call.1} parent=11 // pred_check
          %p183 = pneg %p86
        $region18: #{tpu_custom_call.1} parent=11 // pred_check_branch
          %185 = sbr.rel (%p183) target = $region20
        $region19: #{tpu_custom_call.1} parent=11 // pred_region
          _
        $region20: #{tpu_custom_call.1} parent=11 // pred_fallthru
          _
        // Predicated region
        $region21: #{tpu_custom_call.1} parent=11 // pred_check
          %p186 = pneg %p107
        $region22: #{tpu_custom_call.1} parent=11 // pred_check_branch
          %188 = sbr.rel (%p186) target = $region24
        $region23: #{tpu_custom_call.1} parent=11 // pred_region
          _
        $region24: #{tpu_custom_call.1} parent=11 // pred_fallthru
          _
        // Predicated region
        $region25: #{tpu_custom_call.1} parent=11 // pred_check
          %p189 = pneg %p128
        $region26: #{tpu_custom_call.1} parent=11 // pred_check_branch
          %191 = sbr.rel (%p189) target = $region28
        $region27: #{tpu_custom_call.1} parent=11 // pred_region
          _
        $region28: #{tpu_custom_call.1} parent=11 // pred_fallthru
          _
      $region12: #{tpu_custom_call.1} parent=5 // pred_fallthru
        _
      %p192 = scmp.lt.s32.totalorder %s18, 3
      // Predicated region
      $region29: #{tpu_custom_call.1} parent=5 // pred_check
        %p193 = pneg %p192
      $region30: #{tpu_custom_call.1} parent=5 // pred_check_branch
        %195 = sbr.rel (%p193) target = $region32
      $region31: #{tpu_custom_call.1} parent=5 // pred_region
        // Predicated region
        $region33: #{tpu_custom_call.1} parent=31 // pred_check
          %p196 = pneg %p38
        $region34: #{tpu_custom_call.1} parent=31 // pred_check_branch
          %198 = sbr.rel (%p196) target = $region36
        $region35: #{tpu_custom_call.1} parent=31 // pred_region
          %s199 = sand.u32 %s28, 1
          %s200 = scalar_lea.sflag [#allocation3], %s199
          %s201 = sand.u32 %s28, 1
          %s202 = smul.addr %s201, 8
          %s203 = scalar_lea.vmem [#allocation2], %s202
          %205 = vsyncadd %s200, 0
          %s206 = smul.addr %s18, 8
          %s207 = scalar_lea.hbm %s0, %s206
          %s209 = sshll.u32 %s207, 4
          %s210 = int_to_ptr.hbm [resolvable:$true] %s209
          %s211 = sshll.u32 %s203, 4
          %s212 = int_to_ptr.vmem [resolvable:$true] %s211
          %214 = dma.hbm_to_vmem [thread:$0]  %s210, 128, %s212, %s200
        $region36: #{tpu_custom_call.1} parent=31 // pred_fallthru
          _
      $region32: #{tpu_custom_call.1} parent=5 // pred_fallthru
        _
      %p215 = scmp.le.s32.totalorder 1, %s18
      %p216 = scmp.lt.s32.totalorder %s18, 4
      %p217 = pnand %p215, %p216
      %p218 = pneg %p217
      // Predicated region
      $region37: #{tpu_custom_call.1} parent=5 // pred_check
        _
      $region38: #{tpu_custom_call.1} parent=5 // pred_check_branch
        %220 = sbr.rel (%p217) target = $region40
      $region39: #{tpu_custom_call.1} parent=5 // pred_region
        %s221 = ssub.s32 %s18, 1
        %s222 = sand.u32 %s31, 1
        %s223 = scalar_lea.sflag [#allocation3], %s222
        %s224 = sand.u32 %s31, 1
        %s225 = smul.addr %s224, 8
        %s226 = scalar_lea.vmem [#allocation2], %s225
        // Predicated region
        $region41: #{tpu_custom_call.1} parent=39 // pred_check
          %p227 = pneg %p44
        $region42: #{tpu_custom_call.1} parent=39 // pred_check_branch
          %229 = sbr.rel (%p227) target = $region44
        $region43: #{tpu_custom_call.1} parent=39 // pred_region
          %231 = dma.done %s223, 128
        $region44: #{tpu_custom_call.1} parent=39 // pred_fallthru
          _
        // Predicated region
        $region45: #{tpu_custom_call.1} parent=39 // pred_check
          %p232 = pneg %p65
        $region46: #{tpu_custom_call.1} parent=39 // pred_check_branch
          %234 = sbr.rel (%p232) target = $region48
        $region47: #{tpu_custom_call.1} parent=39 // pred_region
          %236 = dma.done [#allocation6], 2048
        $region48: #{tpu_custom_call.1} parent=39 // pred_fallthru
          _
        %s237 = sand.u32 %s31, 1
        %s238 = scalar_lea.sflag [#allocation3], %s237
        %s239 = sand.u32 %s31, 1
        %s240 = smul.addr %s239, 8
        %s241 = scalar_lea.vmem [#allocation2], %s240
        %p242 = pneg %p44
        %p243 = pneg %p41
        %p244 = pneg %p65
        %p245 = pneg %p62
        %p246 = pneg %p86
        %p247 = pneg %p83
        %p248 = pneg %p107
        %p249 = pneg %p104
        %p250 = pneg %p128
        %p251 = pneg %p125
        %p252 = pneg %p154
        %p253 = pneg %p151
        %s254 = sand.u32 %s141, 1
        %s255 = scalar_lea.sflag [#allocation4], %s254
        %s256 = sand.u32 %s141, 1
        %s257 = smul.addr %s256, 8
        %s258 = scalar_lea.vmem [#allocation7], %s257
        %v259 = vld [vmem:[%s226] sm:$0xff]
        %v260 = vld [vmem:[#allocation5] sm:$0xff]
        %v261 = vld [vmem:[#allocation5 + $0x8] sm:$0xff]
        %v262 = vld [vmem:[#allocation5 + $0x10] sm:$0xff]
        %v263 = vld [vmem:[#allocation5 + $0x18] sm:$0xff]
        %v264 = vld [vmem:[#allocation5 + $0x20] sm:$0xff]
        %v265 = vld [vmem:[#allocation5 + $0x28] sm:$0xff]
        %v266 = vld [vmem:[#allocation5 + $0x30] sm:$0xff]
        %v267 = vld [vmem:[#allocation5 + $0x38] sm:$0xff]
        %v268 = vld [vmem:[#allocation5 + $0x40] sm:$0xff]
        %v269 = vld [vmem:[#allocation5 + $0x48] sm:$0xff]
        %v270 = vld [vmem:[#allocation5 + $0x50] sm:$0xff]
        %v271 = vld [vmem:[#allocation5 + $0x58] sm:$0xff]
        %v272 = vld [vmem:[#allocation5 + $0x60] sm:$0xff]
        %v273 = vld [vmem:[#allocation5 + $0x68] sm:$0xff]
        %v274 = vld [vmem:[#allocation5 + $0x70] sm:$0xff]
        %v275 = vld [vmem:[#allocation5 + $0x78] sm:$0xff]
        %276 = vmatpush.msra.mxu0 %v275
        %277 = vmatpush.msra.mxu0 %v274
        %278 = vmatpush.msra.mxu0 %v273
        %279 = vmatpush.msra.mxu0 %v272
        %280 = vmatpush.msra.mxu0 %v271
        %281 = vmatpush.msra.mxu0 %v270
        %282 = vmatpush.msra.mxu0 %v269
        %283 = vmatpush.msra.mxu0 %v268
        %284 = vmatpush.msra.mxu0 %v267
        %285 = vmatpush.msra.mxu0 %v266
        %286 = vmatpush.msra.mxu0 %v265
        %287 = vmatpush.msra.mxu0 %v264
        %288 = vmatpush.msra.mxu0 %v263
        %289 = vmatpush.msra.mxu0 %v262
        %290 = vmatpush.msra.mxu0 %v261
        %291 = vmatpush.msra.mxu0 %v260
        %292 = vmatmul.f32.gmra.mxu0 %v259
        %v293 = vpop.f32.mrf.mxu0
        %v294 = vadd.f32 0.0, %v293
        %295 = vdwg.mxu0
        %v296 = vadd.f32 %v259, %v294
        %v297 = vld [vmem:[%s2] sm:$0x1]
        %v299 = vperm.slane %v297, 0
        %v301 = vadd.f32 %v296, %v299
        %v302 = vld [vmem:[%s3] sm:$0x1]
        %v303 = vld [vmem:[%s4] sm:$0x1]
        %304 = vadd.xlane.f32.xlu0 %v301
        %v305 = vpop.xlane.xlu0 %304
        %v306 = vrcp.pop 128.0
        %v307 = vmul.f32 128.0, %v306
        %v308 = vsub.f32 1.0, %v307
        %v309 = vmul.f32 %v306, %v308
        %v310 = vadd.f32 %v306, %v309
        %vm311 = vweird.f32 %v306
        %v312 = vsel %vm311, %v306, %v310
        %v313 = vmul.f32 %v305, %v312
        %v314 = vsub.f32 %v301, %v313
        %v315 = vmul.f32 %v314, %v314
        %316 = vadd.xlane.f32.xlu0 %v315
        %v317 = vpop.xlane.xlu0 %316
        %v318 = vrcp.pop 127.0
        %v319 = vmul.f32 127.0, %v318
        %v320 = vsub.f32 1.0, %v319
        %v321 = vmul.f32 %v318, %v320
        %v322 = vadd.f32 %v318, %v321
        %vm323 = vweird.f32 %v318
        %v324 = vsel %vm323, %v318, %v322
        %v325 = vmul.f32 %v317, %v324
        %v326 = vrsqrt.pop %v325
        %v327 = vmul.f32 %v326, %v325
        %v328 = vmul.f32 %v327, %v326
        %v329 = vmul.f32 0.5, %v328
        %v330 = vsub.f32 1.5, %v329
        %v331 = vmul.f32 %v326, %v330
        %v332 = vmul.f32 %v325, %v331
        %vm333 = vcmp.eq.f32.partialorder %v325, inf
        %v334 = vsel %vm333, %v325, %v332
        %vm335 = vcmp.eq.f32.partialorder %v325, 0.0
        %v336 = vand.u32 %v325, 2147483648
        %v337 = vsel %vm335, %v336, %v334
        %v338 = vadd.f32 %v337, 1e-06
        %v339 = vrcp.pop %v338
        %v340 = vmul.f32 %v338, %v339
        %v341 = vsub.f32 2.0, %v340
        %v342 = vmul.f32 %v339, %v341
        %v344 = vperm.slane %v302, 0
        %v346 = vmul.f32 %v344, %v314
        %v347 = vmul.f32 %v346, %v342
        %v349 = vperm.slane %v303, 0
        %v351 = vadd.f32 %v347, %v349
        %352 = vst [vmem:[%s258] sm:$0xff] %v351
        %s353 = sand.u32 %s141, 1
        %s354 = scalar_lea.sflag [#allocation4], %s353
        %s355 = sand.u32 %s141, 1
        %s356 = smul.addr %s355, 8
        %s357 = scalar_lea.vmem [#allocation7], %s356
        // Predicated region
        $region49: #{tpu_custom_call.1} parent=39 // pred_check
          %p358 = pneg %p151
        $region50: #{tpu_custom_call.1} parent=39 // pred_check_branch
          %360 = sbr.rel (%p358) target = $region52
        $region51: #{tpu_custom_call.1} parent=39 // pred_region
          %362 = vsyncadd %s354, 0
          %s363 = smul.addr %s23, 8
          %s364 = scalar_lea.hbm %s5, %s363
          %s366 = sshll.u32 %s357, 4
          %s367 = int_to_ptr.vmem [resolvable:$true] %s366
          %s368 = sshll.u32 %s364, 4
          %s369 = int_to_ptr.hbm [resolvable:$true] %s368
          %371 = dma.vmem_to_hbm [thread:$0]  %s367, 128, %s369, %s354
        $region52: #{tpu_custom_call.1} parent=39 // pred_fallthru
          _
      $region40: #{tpu_custom_call.1} parent=5 // pred_fallthru
        _
      %p372 = scmp.le.s32.totalorder 2, %s18
      // Predicated region
      $region53: #{tpu_custom_call.1} parent=5 // pred_check
        %p373 = pneg %p372
      $region54: #{tpu_custom_call.1} parent=5 // pred_check_branch
        %375 = sbr.rel (%p373) target = $region56
      $region55: #{tpu_custom_call.1} parent=5 // pred_region
        %s376 = ssub.s32 %s18, 2
        // Predicated region
        $region57: #{tpu_custom_call.1} parent=55 // pred_check
          %p377 = pneg %p157
        $region58: #{tpu_custom_call.1} parent=55 // pred_check_branch
          %379 = sbr.rel (%p377) target = $region60
        $region59: #{tpu_custom_call.1} parent=55 // pred_region
          %s380 = sand.u32 %s142, 1
          %s381 = scalar_lea.sflag [#allocation4], %s380
          %s382 = sand.u32 %s142, 1
          %s383 = smul.addr %s382, 8
          %s384 = scalar_lea.vmem [#allocation7], %s383
          %386 = dma.done %s381, 128
        $region60: #{tpu_custom_call.1} parent=55 // pred_fallthru
          _
      $region56: #{tpu_custom_call.1} parent=5 // pred_fallthru
        _
    $region6: #{tpu_custom_call.1} parent=1 // loop_footer
      %s22 = sadd.s32 1, %s18
    $region7: #{tpu_custom_call.1} parent=1 // loop_footer_branch
      %17 = sbr.rel target = $region3
    $region8: #{tpu_custom_call.1} parent=1 // loop_exit
      _
    %387 = vsyncpa [#allocation3], 1
    %s388 = scalar_lea.sflag [#allocation3], 1
    %389 = vsyncpa %s388, 1
    %390 = vsyncpa [#allocation6], 1
    %391 = vsyncpa [#allocation4], 1
    %s392 = scalar_lea.sflag [#allocation4], 1
    %393 = vsyncpa %s392, 1

</llo_original>
